<compile_context>
chip_gen: v7x
topology: tpu7x:2x2x1
jax: 0.10.0
libtpu: 0.0.40
codegen_flags: <defaults>
</compile_context>

<pallas_src>
import functools

import jax
import jax.numpy as jnp
from jax.experimental import pallas as pl
from jax.experimental.pallas import tpu as pltpu


def _round_up(a, b):
    return (a + b - 1) // b * b


def gem_kernel(p_ref, x_ref, o_ref, acc_ref, *, eps, hw, tile_hw, use_cube,
               use_mxu, need_mask):
    # p_ref: (1,) float32 in SMEM (scalar exponent)
    # x_ref: (tile_r, tile_hw) input tile in VMEM
    # o_ref: (tile_r, 1) output tile in VMEM (written only on the last hw chunk)
    # acc_ref: (tile_r, 1) float32 per-row accumulator (VMEM scratch)
    k = pl.program_id(1)

    @pl.when(k == 0)
    def _():
        acc_ref[...] = jnp.zeros_like(acc_ref)

    x = jnp.maximum(x_ref[...].astype(jnp.float32), eps)   # clamp(min=eps) -> x > 0
    if use_cube:
        xp = x * x * x                       # p == 3.0 fast path: VPU only, no EUP
    else:
        xp = jnp.exp(p_ref[0] * jnp.log(x))  # x ** p for a general float exponent

    if need_mask:
        # Partial last hw chunk: zero the logically-invalid tail lanes so they
        # do not contribute to the row sum.
        col = jax.lax.broadcasted_iota(jnp.int32, xp.shape, 1) + k * tile_hw
        xp = jnp.where(col < hw, xp, 0.0)

    if use_mxu:
        # Row-sum on the (idle) MXU instead of a cross-lane XLU reduce; keeps
        # the 2-XLU v6e/v7x chips HBM-bound.
        ones = jnp.ones((xp.shape[1], 1), jnp.float32)
        part = jnp.dot(xp, ones, preferred_element_type=jnp.float32)
    else:
        part = jnp.sum(xp, axis=-1, keepdims=True)
    acc_ref[...] += part

    @pl.when(k == pl.num_programs(1) - 1)
    def _():
        p = p_ref[0]
        mean = acc_ref[...] * (1.0 / hw)                    # avg_pool2d over (H, W)
        o_ref[...] = jnp.exp(jnp.log(mean) / p).astype(o_ref.dtype)   # mean ** (1/p)


def gem_pallas(x, p, eps=1e-6, target_tile_bytes=4 << 20):
    """x: (N, C, H, W); p: scalar / (1,) float. Returns (N, C, 1, 1) in x.dtype."""
    N, C, H, W = x.shape
    rows, hw = N * C, H * W
    xf = x.reshape(rows, hw)
    p32 = jnp.asarray(p, jnp.float32).reshape(1)

    itemsize = x.dtype.itemsize
    sub = 16 if itemsize == 2 else 8            # sublane multiple (bf16 packs 16)
    lane_hw = _round_up(hw, 128)                # lane-padded hw footprint in VMEM
    row_bytes = lane_hw * itemsize

    if row_bytes <= target_tile_bytes:
        # Common case: full spatial extent in one block, tile over rows only.
        tile_hw = hw
        tile_r = max(sub, (target_tile_bytes // row_bytes) // sub * sub)
        num_hw_chunks = 1
        need_mask = False
    else:
        # Large H*W: chunk hw over a trailing reduction grid axis so the
        # double-buffered tile stays bounded on every generation
        # (v5e 16 MiB scoped default .. v7x 64 MiB physical VMEM).
        tile_hw = max(128, (target_tile_bytes // (sub * itemsize)) // 128 * 128)
        tile_hw = min(tile_hw, lane_hw)
        if tile_hw >= hw:
            tile_hw = hw
        tile_r = sub
        num_hw_chunks = pl.cdiv(hw, tile_hw)
        need_mask = (num_hw_chunks > 1) and (hw % tile_hw != 0)
    if tile_r >= rows:
        tile_r = rows                           # full-dim row block (no OOB rows)

    use_mxu = (tile_hw % 128 == 0)
    # TODO(synk): for hw < 128 (e.g. ResNet-style 7x7 GeM) a C-on-lanes NHWC
    # layout would avoid the lane-padding waste; here we only fall back to an
    # XLU row-sum for the unaligned-hw case.

    grid = (pl.cdiv(rows, tile_r), num_hw_chunks)

    def make_call(use_cube):
        kernel = functools.partial(
            gem_kernel, eps=eps, hw=hw, tile_hw=tile_hw, use_cube=use_cube,
            use_mxu=use_mxu, need_mask=need_mask)
        n_trans = 2 * rows if use_cube else 2 * rows * hw + 2 * rows
        return pl.pallas_call(
            kernel,
            out_shape=jax.ShapeDtypeStruct((rows, 1), x.dtype),
            grid=grid,
            in_specs=[
                pl.BlockSpec(memory_space=pltpu.MemorySpace.SMEM),     # p (scalar)
                pl.BlockSpec((tile_r, tile_hw), lambda i, k: (i, k)),  # x tile
            ],
            out_specs=pl.BlockSpec((tile_r, 1), lambda i, k: (i, 0)),
            scratch_shapes=[pltpu.VMEM((tile_r, 1), jnp.float32)],     # per-row acc
            compiler_params=pltpu.CompilerParams(
                dimension_semantics=("parallel", "arbitrary"),
                vmem_limit_bytes=32 * 1024 * 1024,
            ),
            cost_estimate=pl.CostEstimate(
                flops=5 * rows * hw,
                transcendentals=n_trans,
                bytes_accessed=rows * hw * itemsize + rows * itemsize + 4,
            ),
        )

    # Pick the EUP-free cube kernel statically when p is concrete at trace time
    # (frozen / inference); use a device-side lax.cond only when p is traced.
    try:
        concrete_p = float(p32[0])
    except Exception:   # ConcretizationTypeError under jit tracing
        concrete_p = None

    if concrete_p is not None:
        out = make_call(concrete_p == 3.0)(p32, xf)
    else:
        out = jax.lax.cond(
            p32[0] == 3.0,
            lambda pf, xs: make_call(True)(pf, xs),
            lambda pf, xs: make_call(False)(pf, xs),
            p32, xf,
        )
    return out.reshape(N, C, 1, 1)


def gem_reference(x, p, eps=1e-6):
    xc = jnp.maximum(x.astype(jnp.float32), eps)
    pooled = jnp.mean(xc ** p[0], axis=(-2, -1), keepdims=True)
    return (pooled ** (1.0 / p[0])).astype(x.dtype)


if __name__ == "__main__":
    key = jax.random.PRNGKey(0)
    k0, k1, k2, k3 = jax.random.split(key, 4)
    eps = 1e-6

    # Main shape implied by the module (batch=2, channels=4, spatial=16).
    N, C, H, W = 2, 4, 16, 16
    x = jax.random.normal(k0, (N, C, H, W), dtype=jnp.float32)
    p3 = jnp.ones((1,), dtype=jnp.float32) * 3.0     # nn.Parameter(torch.ones(1)*3)

    y = gem_pallas(x, p3, eps)
    jax.block_until_ready(y)
    y_ref = gem_reference(x, p3, eps)
    assert y.shape == (N, C, 1, 1)
    assert jnp.allclose(y, y_ref, atol=1e-5, rtol=1e-5), (
        f"max abs err {jnp.max(jnp.abs(y - y_ref))}")

    # General (non-cube) exponent path, statically selected.
    p25 = jnp.array([2.5], dtype=jnp.float32)
    y2 = gem_pallas(x, p25, eps)
    jax.block_until_ready(y2)
    assert jnp.allclose(y2, gem_reference(x, p25, eps), atol=1e-5, rtol=1e-5)

    # Traced-p path (device-side lax.cond dispatch) under jit.
    y3 = jax.jit(lambda xx, pp: gem_pallas(xx, pp, eps))(x, p3)
    jax.block_until_ready(y3)
    assert jnp.allclose(y3, y_ref, atol=1e-5, rtol=1e-5)

    # Ragged rows (rows % tile_r != 0) with a small forced tile: partial last
    # row block, no jnp.pad.
    xr = jax.random.normal(k1, (2, 5, 16, 16), dtype=jnp.float32)     # rows = 10
    yr = gem_pallas(xr, p3, eps, target_tile_bytes=8 * 1024)
    jax.block_until_ready(yr)
    assert jnp.allclose(yr, gem_reference(xr, p3, eps), atol=1e-5, rtol=1e-5)

    # hw-chunked accumulator path with a masked partial last chunk (hw = 300).
    xc = jax.random.normal(k2, (2, 5, 15, 20), dtype=jnp.float32)
    yc = gem_pallas(xc, p25, eps, target_tile_bytes=512)
    jax.block_until_ready(yc)
    assert jnp.allclose(yc, gem_reference(xc, p25, eps), atol=1e-5, rtol=1e-5)

    # Small-spatial (ResNet-style 7x7, hw < 128): full-dim block + XLU fallback.
    xs = jax.random.normal(k3, (2, 4, 7, 7), dtype=jnp.float32)
    ys = gem_pallas(xs, p3, eps)
    jax.block_until_ready(ys)
    assert jnp.allclose(ys, gem_reference(xs, p3, eps), atol=1e-5, rtol=1e-5)

    print("KERNEL_OK")
</pallas_src>

<mosaic_0001>
module attributes {stable_mosaic.version = 11 : i64} {
  func.func @gem_kernel(%arg0: i32, %arg1: i32, %arg2: memref<1xf32, #tpu.memory_space<smem>>, %arg3: memref<8x256xf32, #tpu.memory_space<vmem>>, %arg4: memref<8x1xf32, #tpu.memory_space<vmem>>, %arg5: memref<8x1xf32, #tpu.memory_space<vmem>>) attributes {dimension_semantics = [#tpu.dimension_semantics<parallel>, #tpu.dimension_semantics<arbitrary>], iteration_bounds = array<i64: 1, 1>, scalar_prefetch = 0 : i64, scratch_operands = 1 : i64, tpu.core_type = #tpu.core_type<tc>, window_params = [{transform_indices = @transform_0, window_bounds = array<i64: 1>}, {transform_indices = @transform_1, window_bounds = array<i64: 8, 256>}, {transform_indices = @transform_2, window_bounds = array<i64: 8, 1>}]} {
    %c0_i32 = arith.constant 0 : i32
    %0 = arith.cmpi eq, %arg1, %c0_i32 : i32
    %1 = arith.extui %0 : i1 to i32
    %c0_i32_0 = arith.constant 0 : i32
    %2 = arith.cmpi ne, %1, %c0_i32_0 : i32
    scf.if %2 {
      %cst_10 = arith.constant 0.000000e+00 : f32
      %16 = vector.broadcast %cst_10 : f32 to vector<8x1xf32>
      %c0_11 = arith.constant 0 : index
      %c0_12 = arith.constant 0 : index
      %17 = vector.load %arg5[%c0_11, %c0_12] : memref<8x1xf32, #tpu.memory_space<vmem>>, vector<8x1xf32>
      tpu.vector_store %arg5[%c0_11, %c0_12], %16 {strides = array<i32>} : memref<8x1xf32, #tpu.memory_space<vmem>>, vector<8x1xf32>,
    } else {
    }
    %c0 = arith.constant 0 : index
    %c0_1 = arith.constant 0 : index
    %3 = vector.load %arg3[%c0, %c0_1] : memref<8x256xf32, #tpu.memory_space<vmem>>, vector<8x256xf32>
    %cst = arith.constant 9.99999997E-7 : f32
    %4 = vector.broadcast %cst : f32 to vector<8x256xf32>
    %5 = arith.maximumf %3, %4 : vector<8x256xf32>
    %6 = arith.mulf %5, %5 : vector<8x256xf32>
    %7 = arith.mulf %6, %5 : vector<8x256xf32>
    %cst_2 = arith.constant 1.000000e+00 : f32
    %8 = vector.broadcast %cst_2 : f32 to vector<256x1xf32>
    %cst_3 = arith.constant dense<0.000000e+00> : vector<8x1xf32>
    %9 = tpu.matmul %7, %8, %cst_3 {dimension_numbers = #tpu.dot_dimension_numbers<[1], [0], [0], [1], [0, 0, 1, 1], [], []>} : vector<8x256xf32>, vector<256x1xf32>, vector<8x1xf32> -> vector<8x1xf32>
    %c0_4 = arith.constant 0 : index
    %c0_5 = arith.constant 0 : index
    %10 = vector.load %arg5[%c0_4, %c0_5] : memref<8x1xf32, #tpu.memory_space<vmem>>, vector<8x1xf32>
    %11 = arith.addf %10, %9 : vector<8x1xf32>
    %c0_6 = arith.constant 0 : index
    %c0_7 = arith.constant 0 : index
    %12 = vector.load %arg5[%c0_6, %c0_7] : memref<8x1xf32, #tpu.memory_space<vmem>>, vector<8x1xf32>
    tpu.vector_store %arg5[%c0_6, %c0_7], %11 {strides = array<i32>} : memref<8x1xf32, #tpu.memory_space<vmem>>, vector<8x1xf32>,
    %c0_i32_8 = arith.constant 0 : i32
    %13 = arith.cmpi eq, %arg1, %c0_i32_8 : i32
    %14 = arith.extui %13 : i1 to i32
    %c0_i32_9 = arith.constant 0 : i32
    %15 = arith.cmpi ne, %14, %c0_i32_9 : i32
    scf.if %15 {
      %c0_10 = arith.constant 0 : index
      %16 = memref.load %arg2[%c0_10] : memref<1xf32, #tpu.memory_space<smem>>
      %c0_11 = arith.constant 0 : index
      %c0_12 = arith.constant 0 : index
      %17 = vector.load %arg5[%c0_11, %c0_12] : memref<8x1xf32, #tpu.memory_space<vmem>>, vector<8x1xf32>
      %cst_13 = arith.constant 3.906250e-03 : f32
      %18 = vector.broadcast %cst_13 : f32 to vector<8x1xf32>
      %19 = arith.mulf %17, %18 : vector<8x1xf32>
      %20 = math.log %19 : vector<8x1xf32>
      %21 = vector.broadcast %16 : f32 to vector<8x1xf32>
      %22 = arith.divf %20, %21 : vector<8x1xf32>
      %23 = math.exp %22 : vector<8x1xf32>
      %c0_14 = arith.constant 0 : index
      %c0_15 = arith.constant 0 : index
      %24 = vector.load %arg4[%c0_14, %c0_15] : memref<8x1xf32, #tpu.memory_space<vmem>>, vector<8x1xf32>
      tpu.vector_store %arg4[%c0_14, %c0_15], %23 {strides = array<i32>} : memref<8x1xf32, #tpu.memory_space<vmem>>, vector<8x1xf32>,
    } else {
    }
    return
  }
  func.func @transform_0(%arg0: i32, %arg1: i32) -> i32 {
    %c0_i32 = arith.constant 0 : i32
    %c0_i32_0 = arith.constant 0 : i32
    return %c0_i32 : i32
  }
  func.func @transform_1(%arg0: i32, %arg1: i32) -> (i32, i32) {
    %c0_i32 = arith.constant 0 : i32
    return %arg0, %arg1 : i32, i32
  }
  func.func @transform_2(%arg0: i32, %arg1: i32) -> (i32, i32) {
    %c0_i32 = arith.constant 0 : i32
    %c0_i32_0 = arith.constant 0 : i32
    return %arg0, %c0_i32 : i32, i32
  }
}

</mosaic_0001>

<llo_original>
// kernel: tpu_custom_call.1
$region0: #{tpu_custom_call.1}
  #allocation0 [shape = 'u32[]', space=smem, size = 0x4, offset = 0x4, fixed_abs, tag = 'smem constant byte address 0x4 - core index']
  #allocation1 [shape = 'u32[144,128]{1,0:T(1,128)}', space=vmem, size = 0x12000, scoped, tag = 'internal scratch']
  #allocation2 [shape = 'f32[8,1]{1,0:T(8,128)}', space=vmem, size = 0x1000, scoped, tag = 'scratch operand']
  #allocation3 [shape = 'f32[1]{0:T(128)S(6)}', space=smem, size = 0x200, scoped, tag = 'scoped memory for tpu_custom_call.1']
  %s0 = inlined_call_operand.<no memory space> [shape: f32[1], index: 0, kind: input, shape index: {}]
  %s1 = inlined_call_operand.hbm [shape: f32[8,256], index: 1, kind: input, shape index: {}]
  %s2 = inlined_call_operand.vmem [shape: f32[8,1], index: 2, kind: output, shape index: {}]
  %s3 = sld [smem:[#allocation0]]
  $region30: #{tpu_custom_call.1} parent=0
    _
  %s5 = ssub.s32 1, %s3
  %s6 = scalar_select 0, %s5, %s3
  %7 = sst [smem:[#allocation3]] %s0
  $region1: #{tpu_custom_call.1} parent=0
    #allocation4 [shape = 'u8[8192]{0}', space=vmem, size = 0x2000, scoped, tag = 'input window, operand 1, single buffered']
    #allocation5 [shape = 's32[1]{0}', space=sflag, size = 0x4, scoped, tag = 'scoped memory for tpu_custom_call.1']
    %8 = vsyncpa [#allocation5], 0
    // Predicated region
    $region2: #{tpu_custom_call.1} parent=1 // pred_check
      _
    $region3: #{tpu_custom_call.1} parent=1 // pred_check_branch
      %10 = sbr.rel (0) target = $region5
    $region4: #{tpu_custom_call.1} parent=1 // pred_region
      _
    $region5: #{tpu_custom_call.1} parent=1 // pred_fallthru
      _
    // Predicated region
    $region6: #{tpu_custom_call.1} parent=1 // pred_check
      _
    $region7: #{tpu_custom_call.1} parent=1 // pred_check_branch
      %12 = sbr.rel (0) target = $region9
    $region8: #{tpu_custom_call.1} parent=1 // pred_region
      %s14 = ssub.s32 256, 256
      %15 = vsyncadd [#allocation5], %s14
      %s17 = sshll.u32 [#allocation4], 4
      %s18 = int_to_ptr.vmem [resolvable:$true] %s17
      %20 = dma.hbm_to_vmem [thread:$0]  %s1, 256, %s18, [#allocation5]
    $region9: #{tpu_custom_call.1} parent=1 // pred_fallthru
      _
    // Predicated region
    $region10: #{tpu_custom_call.1} parent=1 // pred_check
      _
    $region11: #{tpu_custom_call.1} parent=1 // pred_check_branch
      %22 = sbr.rel (0) target = $region13
    $region12: #{tpu_custom_call.1} parent=1 // pred_region
      %23 = dma.done [#allocation5], 256
    $region13: #{tpu_custom_call.1} parent=1 // pred_fallthru
      _
    %p24 = scmp.eq.s32.totalorder 0, 0
    // Predicated region
    $region14: #{tpu_custom_call.1} parent=1 // pred_check
      %p25 = pneg %p24
    $region15: #{tpu_custom_call.1} parent=1 // pred_check_branch
      %27 = sbr.rel (%p25) target = $region17
    $region16: #{tpu_custom_call.1} parent=1 // pred_region
      %vm28 = vcmask 7168
      %29 = vst.msk [vmem:[#allocation2] sm:$0xff] %vm28, 0.0
    $region17: #{tpu_custom_call.1} parent=1 // pred_fallthru
      _
    %v30 = vld [vmem:[#allocation4] sm:$0xff]
    %v31 = vld [vmem:[#allocation4 + $0x8] sm:$0xff]
    %v32 = vmax.f32 %v30, 1e-06
    %v33 = vmax.f32 %v31, 1e-06
    %v34 = vmul.f32 %v32, %v32
    %v35 = vmul.f32 %v33, %v33
    %v36 = vmul.f32 %v34, %v32
    %v37 = vmul.f32 %v35, %v33
    %38 = vmatprep.subr.mxu0 0.0
    %39 = vmatpush1.msra.mxu0 1.0
    %40 = vmatprep.subr.mxu0 0.0
    %41 = vmatpush1.msra.mxu0 1.0
    %42 = vmatprep.subr.mxu0 0.0
    %43 = vmatpush1.msra.mxu0 1.0
    %44 = vmatprep.subr.mxu0 0.0
    %45 = vmatpush1.msra.mxu0 1.0
    %46 = vmatprep.subr.mxu0 0.0
    %47 = vmatpush1.msra.mxu0 1.0
    %48 = vmatprep.subr.mxu0 0.0
    %49 = vmatpush1.msra.mxu0 1.0
    %50 = vmatprep.subr.mxu0 0.0
    %51 = vmatpush1.msra.mxu0 1.0
    %52 = vmatprep.subr.mxu0 0.0
    %53 = vmatpush1.msra.mxu0 1.0
    %54 = vmatprep.subr.mxu0 0.0
    %55 = vmatpush1.msra.mxu0 1.0
    %56 = vmatprep.subr.mxu0 0.0
    %57 = vmatpush1.msra.mxu0 1.0
    %58 = vmatprep.subr.mxu0 0.0
    %59 = vmatpush1.msra.mxu0 1.0
    %60 = vmatprep.subr.mxu0 0.0
    %61 = vmatpush1.msra.mxu0 1.0
    %62 = vmatprep.subr.mxu0 0.0
    %63 = vmatpush1.msra.mxu0 1.0
    %64 = vmatprep.subr.mxu0 0.0
    %65 = vmatpush1.msra.mxu0 1.0
    %66 = vmatprep.subr.mxu0 0.0
    %67 = vmatpush1.msra.mxu0 1.0
    %68 = vmatprep.subr.mxu0 0.0
    %69 = vmatpush1.msra.mxu0 1.0
    %70 = vmatprep.subr.mxu0 0.0
    %71 = vmatpush1.msra.mxu0 1.0
    %72 = vmatprep.subr.mxu0 0.0
    %73 = vmatpush1.msra.mxu0 1.0
    %74 = vmatprep.subr.mxu0 0.0
    %75 = vmatpush1.msra.mxu0 1.0
    %76 = vmatprep.subr.mxu0 0.0
    %77 = vmatpush1.msra.mxu0 1.0
    %78 = vmatprep.subr.mxu0 0.0
    %79 = vmatpush1.msra.mxu0 1.0
    %80 = vmatprep.subr.mxu0 0.0
    %81 = vmatpush1.msra.mxu0 1.0
    %82 = vmatprep.subr.mxu0 0.0
    %83 = vmatpush1.msra.mxu0 1.0
    %84 = vmatprep.subr.mxu0 0.0
    %85 = vmatpush1.msra.mxu0 1.0
    %86 = vmatprep.subr.mxu0 0.0
    %87 = vmatpush1.msra.mxu0 1.0
    %88 = vmatprep.subr.mxu0 0.0
    %89 = vmatpush1.msra.mxu0 1.0
    %90 = vmatprep.subr.mxu0 0.0
    %91 = vmatpush1.msra.mxu0 1.0
    %92 = vmatprep.subr.mxu0 0.0
    %93 = vmatpush1.msra.mxu0 1.0
    %94 = vmatprep.subr.mxu0 0.0
    %95 = vmatpush1.msra.mxu0 1.0
    %96 = vmatprep.subr.mxu0 0.0
    %97 = vmatpush1.msra.mxu0 1.0
    %98 = vmatprep.subr.mxu0 0.0
    %99 = vmatpush1.msra.mxu0 1.0
    %100 = vmatprep.subr.mxu0 0.0
    %101 = vmatpush1.msra.mxu0 1.0
    %102 = vmatprep.mubr.f32.mxu0 %v37
    %103 = vmatmul.mubr.f32.gmra.mrb[0].mxu0 %v36
    %v104 = vpop.f32.mrb[0].mxu0
    %v105 = vadd.f32 0.0, %v104
    %v106 = vpop.f32.mrb[0].mxu0
    %107 = vdwg.mxu0
    %v108 = vld [vmem:[#allocation2] sm:$0xff]
    %v109 = vadd.f32 %v108, %v105
    %vm110 = vcmask 7168
    %111 = vst.msk [vmem:[#allocation2] sm:$0xff] %vm110, %v109
    // Predicated region
    $region18: #{tpu_custom_call.1} parent=1 // pred_check
      %p112 = pneg %p24
    $region19: #{tpu_custom_call.1} parent=1 // pred_check_branch
      %114 = sbr.rel (%p112) target = $region21
    $region20: #{tpu_custom_call.1} parent=1 // pred_region
      %s115 = sld [smem:[#allocation3]]
      %v116 = vld [vmem:[#allocation2] sm:$0xff]
      %v117 = vmul.f32 %v116, 0.00390625
      %v118 = vlog2.pop %v117
      %v119 = vmul.f32 %v118, 0.6931472
      %v120 = vstv %s115
      %v121 = vrcp.pop %v120
      %v122 = vmul.f32 %v119, %v121
      %v123 = vmul.f32 %v122, 1.442695
      %v124 = vpow.pop %v123
      %125 = vst.msk [vmem:[%s2] sm:$0xff] %vm110, %v124
    $region21: #{tpu_custom_call.1} parent=1 // pred_fallthru
      _
    // Predicated region
    $region22: #{tpu_custom_call.1} parent=1 // pred_check
      _
    $region23: #{tpu_custom_call.1} parent=1 // pred_check_branch
      %127 = sbr.rel (0) target = $region25
    $region24: #{tpu_custom_call.1} parent=1 // pred_region
      _
    $region25: #{tpu_custom_call.1} parent=1 // pred_fallthru
      _
    // Predicated region
    $region26: #{tpu_custom_call.1} parent=1 // pred_check
      _
    $region27: #{tpu_custom_call.1} parent=1 // pred_check_branch
      %129 = sbr.rel (0) target = $region29
    $region28: #{tpu_custom_call.1} parent=1 // pred_region
      _
    $region29: #{tpu_custom_call.1} parent=1 // pred_fallthru
      _
    %130 = vsyncpa [#allocation5], 1

</llo_original>
